<compile_context>
chip_gen: v7x
topology: tpu7x:2x2x1
jax: 0.10.0
libtpu: 0.0.40
codegen_flags: <defaults>
</compile_context>

<pallas_src>
import math

import jax
import jax.numpy as jnp
from jax.experimental import pallas as pl
from jax.experimental.pallas import tpu as pltpu

LANE = 128      # hidden/output weight widths are zero-padded to this for dense MXU tiles
SUBLANE = 8     # f32 sublane group: minimum batch tile


def _round_up(x, m):
    return ((x + m - 1) // m) * m


def actor_mlp_kernel(x_ref, w1_ref, w2_ref, w3_ref, b_ref, o_ref):
    # One batch tile: a = relu(relu(x@W1+b1)@W2+b2)@W3+b3, all f32 (torch semantics).
    f_p = w1_ref.shape[1]          # lane-padded hidden width
    out_p = w3_ref.shape[1]        # lane-padded output width
    n_out = o_ref.shape[-1]        # true (narrow) output width

    x = x_ref[...].astype(jnp.float32)      # torch .float(); squeeze(state,1) via BlockSpec
    h = jnp.dot(x, w1_ref[...], preferred_element_type=jnp.float32) + b_ref[0:1, 0:f_p]
    h = jnp.maximum(h, 0.0)
    h = jnp.dot(h, w2_ref[...], preferred_element_type=jnp.float32) + b_ref[1:2, 0:f_p]
    h = jnp.maximum(h, 0.0)
    a = jnp.dot(h, w3_ref[...], preferred_element_type=jnp.float32) + b_ref[2:3, 0:out_p]
    # Narrow store: only the real n_output lanes go back to HBM.
    o_ref[...] = a[:, :n_out]


def actor_forward(state, params, n_output, *, block_b=1024):
    """state: (B, 1, n_input) or (B, n_input). Returns (B, n_output) float32."""
    w1, w2, w3, b = params
    if state.ndim == 2:
        state = state[:, None, :]
    B, _, n_in = state.shape
    f_p = w1.shape[1]
    out_p = w3.shape[1]

    # Batch tile: as large as block_b, but capped at ceil(B/2) (rounded up to a
    # sublane group) so the grid has >=2 steps whenever possible -> both v7x
    # TensorCores get work; never below one sublane group.
    tb = max(SUBLANE, min(block_b, _round_up(-(-B // 2), SUBLANE)))
    grid = (pl.cdiv(B, tb),)   # ragged last tile handled by Pallas (masked tail writes)

    flops = 2 * B * (n_in * f_p + f_p * f_p + f_p * out_p)
    bytes_accessed = (
        state.size * state.dtype.itemsize
        + sum(a.size * a.dtype.itemsize for a in params)
        + B * n_output * 4
    )

    return pl.pallas_call(
        actor_mlp_kernel,
        out_shape=jax.ShapeDtypeStruct((B, n_output), jnp.float32),
        grid=grid,
        in_specs=[
            # squeeze(state, 1) folded in: middle dim squeezed out of the kernel view
            pl.BlockSpec((tb, None, n_in), lambda i: (i, 0, 0)),
            # weights/biases: constant block index -> fetched once, resident in VMEM
            pl.BlockSpec(w1.shape, lambda i: (0, 0)),
            pl.BlockSpec(w2.shape, lambda i: (0, 0)),
            pl.BlockSpec(w3.shape, lambda i: (0, 0)),
            pl.BlockSpec(b.shape, lambda i: (0, 0)),
        ],
        # Narrow output block: last dim == full array dim (legal), contiguous in HBM.
        out_specs=pl.BlockSpec((tb, n_output), lambda i: (i, 0)),
        compiler_params=pltpu.CompilerParams(
            dimension_semantics=("parallel",)),   # batch tiles shard across v7x's 2 TCs
        cost_estimate=pl.CostEstimate(
            flops=flops, transcendentals=0, bytes_accessed=bytes_accessed),
    )(state, w1, w2, w3, b)


def xavier_uniform(key, fan_in, fan_out, gain):
    bound = gain * math.sqrt(6.0 / (fan_in + fan_out))
    # Stored as (fan_in, fan_out) == torch weight (out, in) transposed.
    return jax.random.uniform(key, (fan_in, fan_out), jnp.float32, -bound, bound)


def linear_bias(key, fan_in, fan_out):
    # torch.nn.Linear default bias init: U(-1/sqrt(fan_in), 1/sqrt(fan_in))
    bound = 1.0 / math.sqrt(fan_in)
    return jax.random.uniform(key, (fan_out,), jnp.float32, -bound, bound)


def init_actor_params(key, n_input, n_features, n_output):
    """f32 weights stored (in, out), zero-padded to lane-dense (128-multiple)
    widths; the 3 biases are packed into one (3, W) f32 array. Padding is exact
    zeros, so padded hidden units stay 0 through relu and the result matches
    the unpadded torch network."""
    k = jax.random.split(key, 6)
    f_p = _round_up(n_features, LANE)
    out_p = _round_up(n_output, LANE)
    W = max(f_p, out_p)
    gain_relu = math.sqrt(2.0)   # torch calculate_gain('relu'); output layer gain 1.0
    w1 = jnp.zeros((n_input, f_p), jnp.float32).at[:, :n_features].set(
        xavier_uniform(k[0], n_input, n_features, gain_relu))
    w2 = jnp.zeros((f_p, f_p), jnp.float32).at[:n_features, :n_features].set(
        xavier_uniform(k[2], n_features, n_features, gain_relu))
    w3 = jnp.zeros((f_p, out_p), jnp.float32).at[:n_features, :n_output].set(
        xavier_uniform(k[4], n_features, n_output, 1.0))
    b = jnp.zeros((3, W), jnp.float32)
    b = b.at[0, :n_features].set(linear_bias(k[1], n_input, n_features))
    b = b.at[1, :n_features].set(linear_bias(k[3], n_features, n_features))
    b = b.at[2, :n_output].set(linear_bias(k[5], n_features, n_output))
    return (w1, w2, w3, b)


def actor_reference(state, params, n_features, n_output):
    # Plain-JAX f32 reference on the UNPADDED weights (true torch semantics).
    w1, w2, w3, b = params
    x = jnp.squeeze(state, 1).astype(jnp.float32)
    hp = jax.lax.Precision.HIGHEST
    h1 = jnp.maximum(jnp.dot(x, w1[:, :n_features], precision=hp) + b[0, :n_features], 0.0)
    h2 = jnp.maximum(
        jnp.dot(h1, w2[:n_features, :n_features], precision=hp) + b[1, :n_features], 0.0)
    return jnp.dot(h2, w3[:n_features, :n_output], precision=hp) + b[2, :n_output]


if __name__ == "__main__":
    key = jax.random.PRNGKey(0)
    k_params, k_state, k_state2 = jax.random.split(key, 3)

    n_input = 16      # input_shape[-1]
    n_features = 32
    n_output = 4      # output_shape[0]
    params = init_actor_params(k_params, n_input, n_features, n_output)

    # Case 1: B=8, single tile. state shaped (B, 1, n_input) as in torch forward.
    batch = 8
    state = jax.random.normal(k_state, (batch, 1, n_input), jnp.float32)
    out = jax.block_until_ready(actor_forward(state, params, n_output))
    ref = actor_reference(state, params, n_features, n_output)
    assert out.shape == (batch, n_output)
    assert jnp.allclose(out, ref, atol=2e-2, rtol=2e-2), float(jnp.max(jnp.abs(out - ref)))

    # Case 2: B=12 -> tb=8, grid=(2,), ragged last tile (masked tail writes).
    batch2 = 12
    state2 = jax.random.normal(k_state2, (batch2, 1, n_input), jnp.float32)
    out2 = jax.block_until_ready(actor_forward(state2, params, n_output))
    ref2 = actor_reference(state2, params, n_features, n_output)
    assert out2.shape == (batch2, n_output)
    assert jnp.allclose(out2, ref2, atol=2e-2, rtol=2e-2), float(jnp.max(jnp.abs(out2 - ref2)))

    print("KERNEL_OK")
</pallas_src>

<mosaic_0001>
module attributes {stable_mosaic.version = 11 : i64} {
  func.func @actor_mlp_kernel(%arg0: i32, %arg1: memref<8x1x16xf32, #tpu.memory_space<vmem>>, %arg2: memref<16x128xf32, #tpu.memory_space<vmem>>, %arg3: memref<128x128xf32, #tpu.memory_space<vmem>>, %arg4: memref<128x128xf32, #tpu.memory_space<vmem>>, %arg5: memref<3x128xf32, #tpu.memory_space<vmem>>, %arg6: memref<8x4xf32, #tpu.memory_space<vmem>>) attributes {dimension_semantics = [#tpu.dimension_semantics<parallel>], iteration_bounds = array<i64: 1>, scalar_prefetch = 0 : i64, scratch_operands = 0 : i64, tpu.core_type = #tpu.core_type<tc>, window_params = [{transform_indices = @transform_0, window_bounds = array<i64: 8, 1, 16>}, {pipeline_mode = #tpu.pipeline_mode<synchronous>, transform_indices = @transform_1, window_bounds = array<i64: 16, 128>}, {pipeline_mode = #tpu.pipeline_mode<synchronous>, transform_indices = @transform_2, window_bounds = array<i64: 128, 128>}, {pipeline_mode = #tpu.pipeline_mode<synchronous>, transform_indices = @transform_3, window_bounds = array<i64: 128, 128>}, {pipeline_mode = #tpu.pipeline_mode<synchronous>, transform_indices = @transform_4, window_bounds = array<i64: 3, 128>}, {transform_indices = @transform_5, window_bounds = array<i64: 8, 4>}]} {
    %c0 = arith.constant 0 : index
    %c0_0 = arith.constant 0 : index
    %c0_1 = arith.constant 0 : index
    %0 = vector.load %arg1[%c0, %c0_0, %c0_1] : memref<8x1x16xf32, #tpu.memory_space<vmem>>, vector<8x1x16xf32>
    %1 = vector.shape_cast %0 : vector<8x1x16xf32> to vector<8x16xf32>
    %c0_2 = arith.constant 0 : index
    %c0_3 = arith.constant 0 : index
    %2 = vector.load %arg2[%c0_2, %c0_3] : memref<16x128xf32, #tpu.memory_space<vmem>>, vector<16x128xf32>
    %cst = arith.constant dense<0.000000e+00> : vector<8x128xf32>
    %3 = tpu.matmul %1, %2, %cst {dimension_numbers = #tpu.dot_dimension_numbers<[1], [0], [0], [1], [0, 0, 1, 1], [], []>} : vector<8x16xf32>, vector<16x128xf32>, vector<8x128xf32> -> vector<8x128xf32>
    %c0_4 = arith.constant 0 : index
    %c0_5 = arith.constant 0 : index
    %4 = vector.load %arg5[%c0_4, %c0_5] : memref<3x128xf32, #tpu.memory_space<vmem>>, vector<1x128xf32>
    %5 = vector.broadcast %4 : vector<1x128xf32> to vector<8x128xf32>
    %6 = arith.addf %3, %5 : vector<8x128xf32>
    %cst_6 = arith.constant 0.000000e+00 : f32
    %7 = vector.broadcast %cst_6 : f32 to vector<8x128xf32>
    %8 = arith.maximumf %6, %7 : vector<8x128xf32>
    %c0_7 = arith.constant 0 : index
    %c0_8 = arith.constant 0 : index
    %9 = vector.load %arg3[%c0_7, %c0_8] : memref<128x128xf32, #tpu.memory_space<vmem>>, vector<128x128xf32>
    %cst_9 = arith.constant dense<0.000000e+00> : vector<8x128xf32>
    %10 = tpu.matmul %8, %9, %cst_9 {dimension_numbers = #tpu.dot_dimension_numbers<[1], [0], [0], [1], [0, 0, 1, 1], [], []>} : vector<8x128xf32>, vector<128x128xf32>, vector<8x128xf32> -> vector<8x128xf32>
    %c1 = arith.constant 1 : index
    %c0_10 = arith.constant 0 : index
    %11 = vector.load %arg5[%c1, %c0_10] : memref<3x128xf32, #tpu.memory_space<vmem>>, vector<1x128xf32>
    %12 = vector.broadcast %11 : vector<1x128xf32> to vector<8x128xf32>
    %13 = arith.addf %10, %12 : vector<8x128xf32>
    %cst_11 = arith.constant 0.000000e+00 : f32
    %14 = vector.broadcast %cst_11 : f32 to vector<8x128xf32>
    %15 = arith.maximumf %13, %14 : vector<8x128xf32>
    %c0_12 = arith.constant 0 : index
    %c0_13 = arith.constant 0 : index
    %16 = vector.load %arg4[%c0_12, %c0_13] : memref<128x128xf32, #tpu.memory_space<vmem>>, vector<128x128xf32>
    %cst_14 = arith.constant dense<0.000000e+00> : vector<8x128xf32>
    %17 = tpu.matmul %15, %16, %cst_14 {dimension_numbers = #tpu.dot_dimension_numbers<[1], [0], [0], [1], [0, 0, 1, 1], [], []>} : vector<8x128xf32>, vector<128x128xf32>, vector<8x128xf32> -> vector<8x128xf32>
    %c2 = arith.constant 2 : index
    %c0_15 = arith.constant 0 : index
    %18 = vector.load %arg5[%c2, %c0_15] : memref<3x128xf32, #tpu.memory_space<vmem>>, vector<1x128xf32>
    %19 = vector.broadcast %18 : vector<1x128xf32> to vector<8x128xf32>
    %20 = arith.addf %17, %19 : vector<8x128xf32>
    %21 = vector.extract_strided_slice %20 {offsets = [0, 0], sizes = [8, 4], strides = [1, 1]} : vector<8x128xf32> to vector<8x4xf32>
    %c0_16 = arith.constant 0 : index
    %c0_17 = arith.constant 0 : index
    %22 = vector.load %arg6[%c0_16, %c0_17] : memref<8x4xf32, #tpu.memory_space<vmem>>, vector<8x4xf32>
    tpu.vector_store %arg6[%c0_16, %c0_17], %21 {strides = array<i32>} : memref<8x4xf32, #tpu.memory_space<vmem>>, vector<8x4xf32>,
    return
  }
  func.func @transform_0(%arg0: i32) -> (i32, i32, i32) {
    %c0_i32 = arith.constant 0 : i32
    %c0_i32_0 = arith.constant 0 : i32
    %c0_i32_1 = arith.constant 0 : i32
    return %arg0, %c0_i32, %c0_i32_0 : i32, i32, i32
  }
  func.func @transform_1(%arg0: i32) -> (i32, i32) {
    %c0_i32 = arith.constant 0 : i32
    %c0_i32_0 = arith.constant 0 : i32
    %c0_i32_1 = arith.constant 0 : i32
    return %c0_i32, %c0_i32_0 : i32, i32
  }
  func.func @transform_2(%arg0: i32) -> (i32, i32) {
    %c0_i32 = arith.constant 0 : i32
    %c0_i32_0 = arith.constant 0 : i32
    %c0_i32_1 = arith.constant 0 : i32
    return %c0_i32, %c0_i32_0 : i32, i32
  }
  func.func @transform_3(%arg0: i32) -> (i32, i32) {
    %c0_i32 = arith.constant 0 : i32
    %c0_i32_0 = arith.constant 0 : i32
    %c0_i32_1 = arith.constant 0 : i32
    return %c0_i32, %c0_i32_0 : i32, i32
  }
  func.func @transform_4(%arg0: i32) -> (i32, i32) {
    %c0_i32 = arith.constant 0 : i32
    %c0_i32_0 = arith.constant 0 : i32
    %c0_i32_1 = arith.constant 0 : i32
    return %c0_i32, %c0_i32_0 : i32, i32
  }
  func.func @transform_5(%arg0: i32) -> (i32, i32) {
    %c0_i32 = arith.constant 0 : i32
    %c0_i32_0 = arith.constant 0 : i32
    return %arg0, %c0_i32 : i32, i32
  }
}

</mosaic_0001>

<llo_original>
// kernel: tpu_custom_call.1
$region0: #{tpu_custom_call.1}
  #allocation0 [shape = 'u32[]', space=smem, size = 0x4, offset = 0x4, fixed_abs, tag = 'smem constant byte address 0x4 - core index']
  #allocation1 [shape = 'u32[144,128]{1,0:T(1,128)}', space=vmem, size = 0x12000, scoped, tag = 'internal scratch']
  %s0 = inlined_call_operand.hbm [shape: f32[8,1,16], index: 0, kind: input, shape index: {}]
  %s1 = inlined_call_operand.hbm [shape: f32[16,128], index: 1, kind: input, shape index: {}]
  %s2 = inlined_call_operand.hbm [shape: f32[128,128], index: 2, kind: input, shape index: {}]
  %s3 = inlined_call_operand.hbm [shape: f32[128,128], index: 3, kind: input, shape index: {}]
  %s4 = inlined_call_operand.vmem [shape: f32[3,128], index: 4, kind: input, shape index: {}]
  %s5 = inlined_call_operand.vmem [shape: f32[8,4], index: 5, kind: output, shape index: {}]
  %s6 = sld [smem:[#allocation0]]
  $region46: #{tpu_custom_call.1} parent=0
    _
  %s8 = ssub.s32 1, %s6
  %s9 = scalar_select 0, %s8, %s6
  $region1: #{tpu_custom_call.1} parent=0
    #allocation2 [shape = 'u8[4096]{0}', space=vmem, size = 0x1000, scoped, tag = 'input window, operand 0, single buffered']
    #allocation3 [shape = 's32[1]{0}', space=sflag, size = 0x4, scoped, tag = 'scoped memory for tpu_custom_call.1']
    #allocation4 [shape = 'u8[8192]{0}', space=vmem, size = 0x2000, scoped, tag = 'input window, operand 1, single buffered']
    #allocation5 [shape = 's32[1]{0}', space=sflag, size = 0x4, scoped, tag = 'scoped memory for tpu_custom_call.1']
    #allocation6 [shape = 'u8[65536]{0}', space=vmem, size = 0x10000, scoped, tag = 'input window, operand 2, single buffered']
    #allocation7 [shape = 'u8[65536]{0}', space=vmem, size = 0x10000, scoped, tag = 'input window, operand 3, single buffered']
    #allocation8 [shape = 's32[1]{0}', space=sflag, size = 0x4, scoped, tag = 'scoped memory for tpu_custom_call.1']
    %10 = vsyncpa [#allocation3], 0
    %11 = vsyncpa [#allocation5], 0
    %12 = vsyncpa [#allocation8], 0
    // Predicated region
    $region2: #{tpu_custom_call.1} parent=1 // pred_check
      _
    $region3: #{tpu_custom_call.1} parent=1 // pred_check_branch
      %14 = sbr.rel (0) target = $region5
    $region4: #{tpu_custom_call.1} parent=1 // pred_region
      %s16 = ssub.s32 128, 128
      %17 = vsyncadd [#allocation3], %s16
      %s18 = sshll.u32 [#allocation2], 4
      %s19 = int_to_ptr.vmem [resolvable:$true] %s18
      %24 = dma.hbm_to_vmem [thread:$0]  %s0, 128, %s19, [#allocation3], 16, 16, 1
    $region5: #{tpu_custom_call.1} parent=1 // pred_fallthru
      _
    // Predicated region
    $region6: #{tpu_custom_call.1} parent=1 // pred_check
      _
    $region7: #{tpu_custom_call.1} parent=1 // pred_check_branch
      %26 = sbr.rel (0) target = $region9
    $region8: #{tpu_custom_call.1} parent=1 // pred_region
      %s28 = ssub.s32 256, 256
      %29 = vsyncadd [#allocation5], %s28
      %s30 = sshll.u32 [#allocation4], 4
      %s31 = int_to_ptr.vmem [resolvable:$true] %s30
      %36 = dma.hbm_to_vmem [thread:$0]  %s1, 256, %s31, [#allocation5], 128, 128, 8
    $region9: #{tpu_custom_call.1} parent=1 // pred_fallthru
      _
    // Predicated region
    $region10: #{tpu_custom_call.1} parent=1 // pred_check
      _
    $region11: #{tpu_custom_call.1} parent=1 // pred_check_branch
      %38 = sbr.rel (0) target = $region13
    $region12: #{tpu_custom_call.1} parent=1 // pred_region
      %s40 = ssub.s32 2048, 2048
      %41 = vsyncadd [#allocation5], %s40
      %s42 = sshll.u32 [#allocation6], 4
      %s43 = int_to_ptr.vmem [resolvable:$true] %s42
      %48 = dma.hbm_to_vmem [thread:$0]  %s2, 2048, %s43, [#allocation5], 128, 128, 8
    $region13: #{tpu_custom_call.1} parent=1 // pred_fallthru
      _
    // Predicated region
    $region14: #{tpu_custom_call.1} parent=1 // pred_check
      _
    $region15: #{tpu_custom_call.1} parent=1 // pred_check_branch
      %50 = sbr.rel (0) target = $region17
    $region16: #{tpu_custom_call.1} parent=1 // pred_region
      %s52 = ssub.s32 2048, 2048
      %53 = vsyncadd [#allocation8], %s52
      %s54 = sshll.u32 [#allocation7], 4
      %s55 = int_to_ptr.vmem [resolvable:$true] %s54
      %60 = dma.hbm_to_vmem [thread:$0]  %s3, 2048, %s55, [#allocation8], 128, 128, 8
    $region17: #{tpu_custom_call.1} parent=1 // pred_fallthru
      _
    // Predicated region
    $region18: #{tpu_custom_call.1} parent=1 // pred_check
      _
    $region19: #{tpu_custom_call.1} parent=1 // pred_check_branch
      %62 = sbr.rel (0) target = $region21
    $region20: #{tpu_custom_call.1} parent=1 // pred_region
      _
    $region21: #{tpu_custom_call.1} parent=1 // pred_fallthru
      _
    // Predicated region
    $region22: #{tpu_custom_call.1} parent=1 // pred_check
      _
    $region23: #{tpu_custom_call.1} parent=1 // pred_check_branch
      %64 = sbr.rel (0) target = $region25
    $region24: #{tpu_custom_call.1} parent=1 // pred_region
      %65 = dma.done [#allocation3], 128
    $region25: #{tpu_custom_call.1} parent=1 // pred_fallthru
      _
    // Predicated region
    $region26: #{tpu_custom_call.1} parent=1 // pred_check
      _
    $region27: #{tpu_custom_call.1} parent=1 // pred_check_branch
      %67 = sbr.rel (0) target = $region29
    $region28: #{tpu_custom_call.1} parent=1 // pred_region
      %68 = dma.done [#allocation5], 256
    $region29: #{tpu_custom_call.1} parent=1 // pred_fallthru
      _
    // Predicated region
    $region30: #{tpu_custom_call.1} parent=1 // pred_check
      _
    $region31: #{tpu_custom_call.1} parent=1 // pred_check_branch
      %70 = sbr.rel (0) target = $region33
    $region32: #{tpu_custom_call.1} parent=1 // pred_region
      %71 = dma.done [#allocation5], 2048
    $region33: #{tpu_custom_call.1} parent=1 // pred_fallthru
      _
    // Predicated region
    $region34: #{tpu_custom_call.1} parent=1 // pred_check
      _
    $region35: #{tpu_custom_call.1} parent=1 // pred_check_branch
      %73 = sbr.rel (0) target = $region37
    $region36: #{tpu_custom_call.1} parent=1 // pred_region
      %74 = dma.done [#allocation8], 2048
    $region37: #{tpu_custom_call.1} parent=1 // pred_fallthru
      _
    %v75 = vld [vmem:[#allocation2] sm:$0x1]
    %v76 = vld [vmem:[#allocation2 + $0x1] sm:$0x1]
    %v77 = vld [vmem:[#allocation2 + $0x2] sm:$0x1]
    %v78 = vld [vmem:[#allocation2 + $0x3] sm:$0x1]
    %v79 = vld [vmem:[#allocation2 + $0x4] sm:$0x1]
    %v80 = vld [vmem:[#allocation2 + $0x5] sm:$0x1]
    %v81 = vld [vmem:[#allocation2 + $0x6] sm:$0x1]
    %v82 = vld [vmem:[#allocation2 + $0x7] sm:$0x1]
    %v83 = vld [vmem:[#allocation4] sm:$0xff]
    %v84 = vld [vmem:[#allocation4 + $0x8] sm:$0xff]
    %v85 = vld [vmem:[%s4] sm:$0x1]
    %v86 = vlaneseq
    %v87 = vshrl.u32 %v86, 7
    %v88 = vsub.s32 0, %v87
    %v89 = vrot.slane %v85, %v88
    %v98 = vcombine.low %v75, %v76
    %v99 = vcombine.low %v77, %v78
    %v100 = vcombine.low %v79, %v80
    %v101 = vcombine.low %v81, %v82
    %v103 = vunpack.c.l.s4 1966171168
    %v104 = vunpack.c.0.s8 %v103
    %v105 = vlaneseq
    %v106 = vshrl.u32 %v105, 7
    %v107 = vsub.s32 %v104, %v106
    %v108 = vrot.slane %v98, %v107
    %v110 = vunpack.c.l.s4 1966171168
    %v111 = vunpack.c.0.s8 %v110
    %v112 = vlaneseq
    %v113 = vshrl.u32 %v112, 7
    %v114 = vsub.s32 %v111, %v113
    %v115 = vrot.slane %v99, %v114
    %v117 = vunpack.c.l.s4 1966171168
    %v118 = vunpack.c.0.s8 %v117
    %v119 = vlaneseq
    %v120 = vshrl.u32 %v119, 7
    %v121 = vsub.s32 %v118, %v120
    %v122 = vrot.slane %v100, %v121
    %v124 = vunpack.c.l.s4 1966171168
    %v125 = vunpack.c.0.s8 %v124
    %v126 = vlaneseq
    %v127 = vshrl.u32 %v126, 7
    %v128 = vsub.s32 %v125, %v127
    %v129 = vrot.slane %v101, %v128
    %v130 = vcombine.low %v108, %v115
    %v131 = vcombine.low %v122, %v129
    %v133 = vunpack.c.l.s4 1966171168
    %v134 = vunpack.c.0.s8 %v133
    %v135 = vlaneseq
    %v136 = vshrl.u32 %v135, 7
    %v137 = vsub.s32 %v134, %v136
    %v138 = vrot.slane %v130, %v137
    %v140 = vunpack.c.l.s4 1966171168
    %v141 = vunpack.c.0.s8 %v140
    %v142 = vlaneseq
    %v143 = vshrl.u32 %v142, 7
    %v144 = vsub.s32 %v141, %v143
    %v145 = vrot.slane %v131, %v144
    %v146 = vcombine.low %v138, %v145
    %vm147 = vcmask 130048
    %v148 = vsel %vm147, %v146, 0
    %150 = vmatprep.subr.mxu0 0.0
    %151 = vmatpush1.msra.mxu0 %v83
    %152 = vmatprep.subr.mxu0 0.0
    %153 = vmatpush1.msra.mxu0 %v84
    %154 = vmatprep.subr.mxu0 0.0
    %155 = vmatpush1.msra.mxu0 0.0
    %156 = vmatprep.subr.mxu0 0.0
    %157 = vmatpush1.msra.mxu0 0.0
    %158 = vmatprep.subr.mxu0 0.0
    %159 = vmatpush1.msra.mxu0 0.0
    %160 = vmatprep.subr.mxu0 0.0
    %161 = vmatpush1.msra.mxu0 0.0
    %162 = vmatprep.subr.mxu0 0.0
    %163 = vmatpush1.msra.mxu0 0.0
    %164 = vmatprep.subr.mxu0 0.0
    %165 = vmatpush1.msra.mxu0 0.0
    %166 = vmatprep.subr.mxu0 0.0
    %167 = vmatpush1.msra.mxu0 0.0
    %168 = vmatprep.subr.mxu0 0.0
    %169 = vmatpush1.msra.mxu0 0.0
    %170 = vmatprep.subr.mxu0 0.0
    %171 = vmatpush1.msra.mxu0 0.0
    %172 = vmatprep.subr.mxu0 0.0
    %173 = vmatpush1.msra.mxu0 0.0
    %174 = vmatprep.subr.mxu0 0.0
    %175 = vmatpush1.msra.mxu0 0.0
    %176 = vmatprep.subr.mxu0 0.0
    %177 = vmatpush1.msra.mxu0 0.0
    %178 = vmatprep.subr.mxu0 0.0
    %179 = vmatpush1.msra.mxu0 0.0
    %180 = vmatprep.subr.mxu0 0.0
    %181 = vmatpush1.msra.mxu0 0.0
    %182 = vmatprep.subr.mxu0 0.0
    %183 = vmatpush1.msra.mxu0 0.0
    %184 = vmatprep.subr.mxu0 0.0
    %185 = vmatpush1.msra.mxu0 0.0
    %186 = vmatprep.subr.mxu0 0.0
    %187 = vmatpush1.msra.mxu0 0.0
    %188 = vmatprep.subr.mxu0 0.0
    %189 = vmatpush1.msra.mxu0 0.0
    %190 = vmatprep.subr.mxu0 0.0
    %191 = vmatpush1.msra.mxu0 0.0
    %192 = vmatprep.subr.mxu0 0.0
    %193 = vmatpush1.msra.mxu0 0.0
    %194 = vmatprep.subr.mxu0 0.0
    %195 = vmatpush1.msra.mxu0 0.0
    %196 = vmatprep.subr.mxu0 0.0
    %197 = vmatpush1.msra.mxu0 0.0
    %198 = vmatprep.subr.mxu0 0.0
    %199 = vmatpush1.msra.mxu0 0.0
    %200 = vmatprep.subr.mxu0 0.0
    %201 = vmatpush1.msra.mxu0 0.0
    %202 = vmatprep.subr.mxu0 0.0
    %203 = vmatpush1.msra.mxu0 0.0
    %204 = vmatprep.subr.mxu0 0.0
    %205 = vmatpush1.msra.mxu0 0.0
    %206 = vmatprep.subr.mxu0 0.0
    %207 = vmatpush1.msra.mxu0 0.0
    %208 = vmatprep.subr.mxu0 0.0
    %209 = vmatpush1.msra.mxu0 0.0
    %210 = vmatprep.subr.mxu0 0.0
    %211 = vmatpush1.msra.mxu0 0.0
    %212 = vmatprep.subr.mxu0 0.0
    %213 = vmatpush1.msra.mxu0 0.0
    %214 = vmatprep.mubr.f32.mxu0 0.0
    %215 = vmatmul.mubr.f32.gmra.mrb[0].mxu0 %v148
    %v216 = vpop.f32.mrb[0].mxu0
    %v217 = vadd.f32 %v89, %v216
    %v218 = vpop.f32.mrb[0].mxu0
    %219 = vdwg.mxu0
    %v220 = vmax.f32 %v217, 0.0
    %v221 = vld [vmem:[#allocation6] sm:$0xff]
    %v222 = vld [vmem:[#allocation6 + $0x8] sm:$0xff]
    %v223 = vld [vmem:[#allocation6 + $0x10] sm:$0xff]
    %v224 = vld [vmem:[#allocation6 + $0x18] sm:$0xff]
    %v225 = vld [vmem:[#allocation6 + $0x20] sm:$0xff]
    %v226 = vld [vmem:[#allocation6 + $0x28] sm:$0xff]
    %v227 = vld [vmem:[#allocation6 + $0x30] sm:$0xff]
    %v228 = vld [vmem:[#allocation6 + $0x38] sm:$0xff]
    %v229 = vld [vmem:[#allocation6 + $0x40] sm:$0xff]
    %v230 = vld [vmem:[#allocation6 + $0x48] sm:$0xff]
    %v231 = vld [vmem:[#allocation6 + $0x50] sm:$0xff]
    %v232 = vld [vmem:[#allocation6 + $0x58] sm:$0xff]
    %v233 = vld [vmem:[#allocation6 + $0x60] sm:$0xff]
    %v234 = vld [vmem:[#allocation6 + $0x68] sm:$0xff]
    %v235 = vld [vmem:[#allocation6 + $0x70] sm:$0xff]
    %v236 = vld [vmem:[#allocation6 + $0x78] sm:$0xff]
    %v237 = vld [vmem:[%s4 + $0x1] sm:$0x1]
    %v238 = vlaneseq
    %v239 = vshrl.u32 %v238, 7
    %v240 = vsub.s32 0, %v239
    %v241 = vrot.slane %v237, %v240
    %242 = vmatprep.subr.mxu0 0.0
    %243 = vmatpush1.msra.mxu0 %v221
    %244 = vmatprep.subr.mxu0 0.0
    %245 = vmatpush1.msra.mxu0 %v222
    %246 = vmatprep.subr.mxu0 0.0
    %247 = vmatpush1.msra.mxu0 %v223
    %248 = vmatprep.subr.mxu0 0.0
    %249 = vmatpush1.msra.mxu0 %v224
    %250 = vmatprep.subr.mxu0 0.0
    %251 = vmatpush1.msra.mxu0 %v225
    %252 = vmatprep.subr.mxu0 0.0
    %253 = vmatpush1.msra.mxu0 %v226
    %254 = vmatprep.subr.mxu0 0.0
    %255 = vmatpush1.msra.mxu0 %v227
    %256 = vmatprep.subr.mxu0 0.0
    %257 = vmatpush1.msra.mxu0 %v228
    %258 = vmatprep.subr.mxu0 0.0
    %259 = vmatpush1.msra.mxu0 %v229
    %260 = vmatprep.subr.mxu0 0.0
    %261 = vmatpush1.msra.mxu0 %v230
    %262 = vmatprep.subr.mxu0 0.0
    %263 = vmatpush1.msra.mxu0 %v231
    %264 = vmatprep.subr.mxu0 0.0
    %265 = vmatpush1.msra.mxu0 %v232
    %266 = vmatprep.subr.mxu0 0.0
    %267 = vmatpush1.msra.mxu0 %v233
    %268 = vmatprep.subr.mxu0 0.0
    %269 = vmatpush1.msra.mxu0 %v234
    %270 = vmatprep.subr.mxu0 0.0
    %271 = vmatpush1.msra.mxu0 %v235
    %272 = vmatprep.subr.mxu0 0.0
    %273 = vmatpush1.msra.mxu0 %v236
    %274 = vmatprep.subr.mxu0 0.0
    %275 = vmatpush1.msra.mxu0 0.0
    %276 = vmatprep.subr.mxu0 0.0
    %277 = vmatpush1.msra.mxu0 0.0
    %278 = vmatprep.subr.mxu0 0.0
    %279 = vmatpush1.msra.mxu0 0.0
    %280 = vmatprep.subr.mxu0 0.0
    %281 = vmatpush1.msra.mxu0 0.0
    %282 = vmatprep.subr.mxu0 0.0
    %283 = vmatpush1.msra.mxu0 0.0
    %284 = vmatprep.subr.mxu0 0.0
    %285 = vmatpush1.msra.mxu0 0.0
    %286 = vmatprep.subr.mxu0 0.0
    %287 = vmatpush1.msra.mxu0 0.0
    %288 = vmatprep.subr.mxu0 0.0
    %289 = vmatpush1.msra.mxu0 0.0
    %290 = vmatprep.subr.mxu0 0.0
    %291 = vmatpush1.msra.mxu0 0.0
    %292 = vmatprep.subr.mxu0 0.0
    %293 = vmatpush1.msra.mxu0 0.0
    %294 = vmatprep.subr.mxu0 0.0
    %295 = vmatpush1.msra.mxu0 0.0
    %296 = vmatprep.subr.mxu0 0.0
    %297 = vmatpush1.msra.mxu0 0.0
    %298 = vmatprep.subr.mxu0 0.0
    %299 = vmatpush1.msra.mxu0 0.0
    %300 = vmatprep.subr.mxu0 0.0
    %301 = vmatpush1.msra.mxu0 0.0
    %302 = vmatprep.subr.mxu0 0.0
    %303 = vmatpush1.msra.mxu0 0.0
    %304 = vmatprep.subr.mxu0 0.0
    %305 = vmatpush1.msra.mxu0 0.0
    %306 = vmatprep.mubr.f32.mxu0 0.0
    %307 = vmatmul.mubr.f32.gmra.mrb[0].mxu0 %v220
    %v308 = vpop.f32.mrb[0].mxu0
    %v309 = vadd.f32 %v241, %v308
    %v310 = vpop.f32.mrb[0].mxu0
    %311 = vdwg.mxu0
    %v312 = vmax.f32 %v309, 0.0
    %v313 = vld [vmem:[#allocation7] sm:$0xff]
    %v314 = vld [vmem:[#allocation7 + $0x8] sm:$0xff]
    %v315 = vld [vmem:[#allocation7 + $0x10] sm:$0xff]
    %v316 = vld [vmem:[#allocation7 + $0x18] sm:$0xff]
    %v317 = vld [vmem:[#allocation7 + $0x20] sm:$0xff]
    %v318 = vld [vmem:[#allocation7 + $0x28] sm:$0xff]
    %v319 = vld [vmem:[#allocation7 + $0x30] sm:$0xff]
    %v320 = vld [vmem:[#allocation7 + $0x38] sm:$0xff]
    %v321 = vld [vmem:[#allocation7 + $0x40] sm:$0xff]
    %v322 = vld [vmem:[#allocation7 + $0x48] sm:$0xff]
    %v323 = vld [vmem:[#allocation7 + $0x50] sm:$0xff]
    %v324 = vld [vmem:[#allocation7 + $0x58] sm:$0xff]
    %v325 = vld [vmem:[#allocation7 + $0x60] sm:$0xff]
    %v326 = vld [vmem:[#allocation7 + $0x68] sm:$0xff]
    %v327 = vld [vmem:[#allocation7 + $0x70] sm:$0xff]
    %v328 = vld [vmem:[#allocation7 + $0x78] sm:$0xff]
    %v329 = vld [vmem:[%s4 + $0x2] sm:$0x1]
    %v330 = vlaneseq
    %v331 = vshrl.u32 %v330, 7
    %v332 = vsub.s32 0, %v331
    %v333 = vrot.slane %v329, %v332
    %334 = vmatprep.subr.mxu0 0.0
    %335 = vmatpush1.msra.mxu0 %v313
    %336 = vmatprep.subr.mxu0 0.0
    %337 = vmatpush1.msra.mxu0 %v314
    %338 = vmatprep.subr.mxu0 0.0
    %339 = vmatpush1.msra.mxu0 %v315
    %340 = vmatprep.subr.mxu0 0.0
    %341 = vmatpush1.msra.mxu0 %v316
    %342 = vmatprep.subr.mxu0 0.0
    %343 = vmatpush1.msra.mxu0 %v317
    %344 = vmatprep.subr.mxu0 0.0
    %345 = vmatpush1.msra.mxu0 %v318
    %346 = vmatprep.subr.mxu0 0.0
    %347 = vmatpush1.msra.mxu0 %v319
    %348 = vmatprep.subr.mxu0 0.0
    %349 = vmatpush1.msra.mxu0 %v320
    %350 = vmatprep.subr.mxu0 0.0
    %351 = vmatpush1.msra.mxu0 %v321
    %352 = vmatprep.subr.mxu0 0.0
    %353 = vmatpush1.msra.mxu0 %v322
    %354 = vmatprep.subr.mxu0 0.0
    %355 = vmatpush1.msra.mxu0 %v323
    %356 = vmatprep.subr.mxu0 0.0
    %357 = vmatpush1.msra.mxu0 %v324
    %358 = vmatprep.subr.mxu0 0.0
    %359 = vmatpush1.msra.mxu0 %v325
    %360 = vmatprep.subr.mxu0 0.0
    %361 = vmatpush1.msra.mxu0 %v326
    %362 = vmatprep.subr.mxu0 0.0
    %363 = vmatpush1.msra.mxu0 %v327
    %364 = vmatprep.subr.mxu0 0.0
    %365 = vmatpush1.msra.mxu0 %v328
    %366 = vmatprep.subr.mxu0 0.0
    %367 = vmatpush1.msra.mxu0 0.0
    %368 = vmatprep.subr.mxu0 0.0
    %369 = vmatpush1.msra.mxu0 0.0
    %370 = vmatprep.subr.mxu0 0.0
    %371 = vmatpush1.msra.mxu0 0.0
    %372 = vmatprep.subr.mxu0 0.0
    %373 = vmatpush1.msra.mxu0 0.0
    %374 = vmatprep.subr.mxu0 0.0
    %375 = vmatpush1.msra.mxu0 0.0
    %376 = vmatprep.subr.mxu0 0.0
    %377 = vmatpush1.msra.mxu0 0.0
    %378 = vmatprep.subr.mxu0 0.0
    %379 = vmatpush1.msra.mxu0 0.0
    %380 = vmatprep.subr.mxu0 0.0
    %381 = vmatpush1.msra.mxu0 0.0
    %382 = vmatprep.subr.mxu0 0.0
    %383 = vmatpush1.msra.mxu0 0.0
    %384 = vmatprep.subr.mxu0 0.0
    %385 = vmatpush1.msra.mxu0 0.0
    %386 = vmatprep.subr.mxu0 0.0
    %387 = vmatpush1.msra.mxu0 0.0
    %388 = vmatprep.subr.mxu0 0.0
    %389 = vmatpush1.msra.mxu0 0.0
    %390 = vmatprep.subr.mxu0 0.0
    %391 = vmatpush1.msra.mxu0 0.0
    %392 = vmatprep.subr.mxu0 0.0
    %393 = vmatpush1.msra.mxu0 0.0
    %394 = vmatprep.subr.mxu0 0.0
    %395 = vmatpush1.msra.mxu0 0.0
    %396 = vmatprep.subr.mxu0 0.0
    %397 = vmatpush1.msra.mxu0 0.0
    %398 = vmatprep.mubr.f32.mxu0 0.0
    %399 = vmatmul.mubr.f32.gmra.mrb[0].mxu0 %v312
    %v400 = vpop.f32.mrb[0].mxu0
    %v401 = vadd.f32 %v333, %v400
    %v402 = vpop.f32.mrb[0].mxu0
    %403 = vdwg.mxu0
    %vm404 = vcmask 31744
    %405 = vst.msk [vmem:[%s5] sm:$0xff] %vm404, %v401
    // Predicated region
    $region38: #{tpu_custom_call.1} parent=1 // pred_check
      _
    $region39: #{tpu_custom_call.1} parent=1 // pred_check_branch
      %407 = sbr.rel (0) target = $region41
    $region40: #{tpu_custom_call.1} parent=1 // pred_region
      _
    $region41: #{tpu_custom_call.1} parent=1 // pred_fallthru
      _
    // Predicated region
    $region42: #{tpu_custom_call.1} parent=1 // pred_check
      _
    $region43: #{tpu_custom_call.1} parent=1 // pred_check_branch
      %409 = sbr.rel (0) target = $region45
    $region44: #{tpu_custom_call.1} parent=1 // pred_region
      _
    $region45: #{tpu_custom_call.1} parent=1 // pred_fallthru
      _
    %410 = vsyncpa [#allocation3], 1
    %411 = vsyncpa [#allocation5], 1
    %412 = vsyncpa [#allocation8], 1

</llo_original>
